<compile_context>
chip_gen: v6e
topology: v6e:2x2x1
jax: 0.10.0
libtpu: 0.0.40
codegen_flags: <defaults>
</compile_context>

<pallas_src>
import functools

import numpy as np
import jax
import jax.numpy as jnp
from jax.experimental import pallas as pl
from jax.experimental.pallas import tpu as pltpu


def _decoder_kernel(x_ref, aux_ref, wproj_ref, bproj_ref, wgx_ref,
                    w3_ref, b3_ref, mask_ref, out_ref, *, cpad, W, lane):
    x = x_ref[0]            # (CPAD, LANE); padded channel rows are exact zeros
    aux = aux_ref[0]        # (Caux, LANE)

    # Fused projection: rows [0:CPAD) = projected_aux (1x1 conv), row CPAD =
    # the gate's proj-side contribution (wga·proj + wga·bproj + bg folded into
    # the weight/bias), remaining pad rows are zero.
    ext = jnp.dot(wproj_ref[...], aux,
                  preferred_element_type=jnp.float32) + bproj_ref[...]
    proj = ext[:cpad]                         # (CPAD, LANE)
    gate_proj_row = ext[cpad:cpad + 1]        # (1, LANE)

    # gate = sigmoid(Conv1x1(concat([x, proj]))): only the x-side sublane
    # reduce remains; sigmoid's exp runs on the EUP slot.
    gl = jnp.sum(wgx_ref[...] * x, axis=0, keepdims=True) + gate_proj_row
    gate = jax.nn.sigmoid(gl)                 # (1, LANE)
    xg = proj + gate * (x - proj)             # (CPAD, LANE); pad rows stay 0

    # 3x3 conv, padding=1: 9 shifted taps via lane rolls (modulus = LANE so
    # the batch fold is honored).  Wrap-around across image borders (and into
    # neighboring images on the lane axis) is killed by the per-tap masks.
    taps = []
    for kh in range(3):
        for kw in range(3):
            dh, dw = kh - 1, kw - 1
            s = dh * W + dw
            tap = xg if s == 0 else pltpu.roll(xg, (-s) % lane, axis=1)
            if dh != 0 or dw != 0:
                tap = tap * mask_ref[pl.ds(kh * 3 + kw, 1), :]
            taps.append(tap)
    patch = jnp.concatenate(taps, axis=0)     # (9*CPAD, LANE), sublane-aligned
    out = jnp.dot(w3_ref[...], patch,
                  preferred_element_type=jnp.float32) + b3_ref[...]
    out_ref[0] = out                          # (COUTP, LANE): full-tile store


def make_params(key, in_channels, aux_dim, output_channels):
    """Deterministic synthetic parameters (matmul-friendly layouts)."""
    ks = jax.random.split(key, 7)
    s = 0.3
    return dict(
        # project_aux: Conv2d(aux_dim -> in_channels, 1x1)
        wproj=s * jax.random.normal(ks[0], (aux_dim, in_channels), jnp.float32),
        bproj=s * jax.random.normal(ks[1], (1, in_channels), jnp.float32),
        # gate: Conv2d(2*in_channels -> 1, 1x1); weight split into x / proj halves
        wgx=s * jax.random.normal(ks[2], (1, in_channels), jnp.float32),
        wga=s * jax.random.normal(ks[3], (1, in_channels), jnp.float32),
        bg=s * jax.random.normal(ks[4], (1, 1), jnp.float32),
        # conv_out: Conv2d(in_channels -> output_channels, 3x3, pad=1)
        # stored as (9, Cin, Cout) with tap index kh*3+kw
        w3=s * jax.random.normal(ks[5], (9, in_channels, output_channels), jnp.float32),
        b3=s * jax.random.normal(ks[6], (1, output_channels), jnp.float32),
    )


def decoder_forward(x_nchw, aux_nchw, params, *, images_per_step=None):
    # TODO(synk): aux_input=None branch (plain conv_out on x) not exercised;
    #             this wrapper implements the gated cross-attention path.
    B, Cin, H, W = x_nchw.shape
    Caux = aux_nchw.shape[1]
    Cout = params['b3'].shape[-1]
    HW = H * W
    CPAD = max(8, ((Cin + 7) // 8) * 8)       # sublane-aligned channel pad
    CPE = CPAD + 8                            # + gate-proj row (+ pad)
    COUTP = max(8, ((Cout + 7) // 8) * 8)     # full-tile output stores

    # Batch fold: Bt images per grid step on the lane axis.  Default keeps
    # >= 2 "parallel" grid steps when B >= 2 (feeds both v7x TensorCores)
    # while still widening lanes for larger batches.
    if images_per_step is None:
        images_per_step = max(1, B // 2)
    steps = -(-B // images_per_step)
    Bpad = steps * images_per_step
    LANE = images_per_step * HW

    # NCHW -> (steps, C, LANE): batch folded onto the lane axis.
    x_flat = x_nchw.reshape(B, Cin, HW)
    aux_flat = aux_nchw.reshape(B, Caux, HW)
    if Bpad != B:
        x_flat = jnp.pad(x_flat, ((0, Bpad - B), (0, 0), (0, 0)))
        aux_flat = jnp.pad(aux_flat, ((0, Bpad - B), (0, 0), (0, 0)))
    x_l = jnp.transpose(x_flat.reshape(steps, images_per_step, Cin, HW),
                        (0, 2, 1, 3)).reshape(steps, Cin, LANE)
    aux_l = jnp.transpose(aux_flat.reshape(steps, images_per_step, Caux, HW),
                          (0, 2, 1, 3)).reshape(steps, Caux, LANE)
    x_p = jnp.pad(x_l, ((0, 0), (0, CPAD - Cin), (0, 0)))

    # --- parameter re-layout (tiny, channel-only transforms) ---------------
    # Fused projection weight: rows [0:Cin) = Wproj^T, row CPAD = wga @ Wproj.
    g_row = params['wproj'] @ params['wga'][0]                       # (Caux,)
    gate_bias = jnp.sum(params['wga'] * params['bproj']) + params['bg'][0, 0]
    wproj_ext = jnp.zeros((CPE, Caux), jnp.float32)
    wproj_ext = wproj_ext.at[:Cin, :].set(params['wproj'].T)
    wproj_ext = wproj_ext.at[CPAD, :].set(g_row)
    bproj_ext = jnp.zeros((CPE, 1), jnp.float32)
    bproj_ext = bproj_ext.at[:Cin, 0].set(params['bproj'][0])
    bproj_ext = bproj_ext.at[CPAD, 0].set(gate_bias)

    wgx_p = jnp.pad(params['wgx'].T, ((0, CPAD - Cin), (0, 0)))      # (CPAD, 1)

    w3_p = jnp.pad(params['w3'], ((0, 0), (0, CPAD - Cin), (0, 0)))  # (9, CPAD, Cout)
    w3_flat = jnp.transpose(w3_p, (2, 0, 1)).reshape(Cout, 9 * CPAD)
    w3_flat = jnp.pad(w3_flat, ((0, COUTP - Cout), (0, 0)))          # (COUTP, 9*CPAD)
    b3_t = jnp.pad(params['b3'].T, ((0, COUTP - Cout), (0, 0)))      # (COUTP, 1)

    # Per-tap validity masks (kill H/W wrap of the lane rolls and any bleed
    # across neighboring images on the lane axis), tiled once per image.
    r = np.arange(HW) // W
    c = np.arange(HW) % W
    masks_img = np.zeros((9, HW), np.float32)
    for kh in range(3):
        for kw in range(3):
            dh, dw = kh - 1, kw - 1
            masks_img[kh * 3 + kw] = ((r + dh >= 0) & (r + dh < H)
                                      & (c + dw >= 0) & (c + dw < W))
    masks = jnp.asarray(np.tile(masks_img, (1, images_per_step)))    # (9, LANE)

    kernel = functools.partial(_decoder_kernel, cpad=CPAD, W=W, lane=LANE)

    # Advisory cost estimate so XLA overlaps this small call with neighbors.
    flops = int(2 * steps * LANE * (CPE * Caux + 9 * CPAD * COUTP)
                + 6 * steps * LANE * CPAD)
    bytes_accessed = int(4 * (steps * CPAD * LANE + steps * Caux * LANE
                              + steps * COUTP * LANE + CPE * Caux + CPE
                              + CPAD + COUTP * 9 * CPAD + COUTP + 9 * LANE))
    cost = pl.CostEstimate(flops=flops, transcendentals=int(steps * LANE),
                           bytes_accessed=bytes_accessed)

    # NOTE: at production-like sizes the LANE axis should additionally be
    # tiled (row blocks with a 1-row halo); budget 2x(x)+2x(aux)+2x(out)
    # blocks + resident weights + conv scratch under ~32-48 MiB on v7x
    # (64 MiB VMEM); v5e/v6e can take ~2x larger row blocks.
    out_flat = pl.pallas_call(
        kernel,
        out_shape=jax.ShapeDtypeStruct((steps, COUTP, LANE), jnp.float32),
        grid=(steps,),
        in_specs=[
            pl.BlockSpec((1, CPAD, LANE), lambda b: (b, 0, 0)),
            pl.BlockSpec((1, Caux, LANE), lambda b: (b, 0, 0)),
            pl.BlockSpec((CPE, Caux), lambda b: (0, 0)),
            pl.BlockSpec((CPE, 1), lambda b: (0, 0)),
            pl.BlockSpec((CPAD, 1), lambda b: (0, 0)),
            pl.BlockSpec((COUTP, 9 * CPAD), lambda b: (0, 0)),
            pl.BlockSpec((COUTP, 1), lambda b: (0, 0)),
            pl.BlockSpec((9, LANE), lambda b: (0, 0)),
        ],
        out_specs=pl.BlockSpec((1, COUTP, LANE), lambda b: (b, 0, 0)),
        compiler_params=pltpu.CompilerParams(
            dimension_semantics=("parallel",),   # batch-block axis -> v7x cores
            vmem_limit_bytes=32 * 1024 * 1024),
        cost_estimate=cost,
    )(x_p, aux_l, wproj_ext, bproj_ext, wgx_p, w3_flat, b3_t, masks)

    # (steps, COUTP, LANE) -> NCHW, drop channel/batch padding.
    out = out_flat.reshape(steps, COUTP, images_per_step, HW)
    out = jnp.transpose(out, (0, 2, 1, 3)).reshape(Bpad, COUTP, HW)
    return out[:B, :Cout].reshape(B, Cout, H, W)


def reference_forward(x, aux, params):
    """Pure-JAX (XLA) reference matching the PyTorch module semantics."""
    Cin = x.shape[1]
    Cout = params['b3'].shape[-1]
    proj = (jnp.einsum('bahw,ac->bchw', aux, params['wproj'])
            + params['bproj'].reshape(1, -1, 1, 1))
    gl = (jnp.einsum('bchw,oc->bohw', x, params['wgx'])
          + jnp.einsum('bchw,oc->bohw', proj, params['wga'])
          + params['bg'].reshape(1, 1, 1, 1))
    gate = jax.nn.sigmoid(gl)
    xg = gate * x + (1.0 - gate) * proj
    w_oihw = jnp.transpose(params['w3'].reshape(3, 3, Cin, Cout), (3, 2, 0, 1))
    out = jax.lax.conv_general_dilated(
        xg, w_oihw, window_strides=(1, 1), padding='SAME',
        dimension_numbers=('NCHW', 'OIHW', 'NCHW'))
    return out + params['b3'].reshape(1, -1, 1, 1)


if __name__ == "__main__":
    B, Cin, Caux, Cout, H, W = 2, 4, 8, 4, 16, 16
    key = jax.random.PRNGKey(0)
    kx, ka, kp = jax.random.split(key, 3)
    x = jax.random.normal(kx, (B, Cin, H, W), jnp.float32)
    aux = jax.random.normal(ka, (B, Caux, H, W), jnp.float32)
    params = make_params(kp, Cin, Caux, Cout)

    out = decoder_forward(x, aux, params)
    out = jax.block_until_ready(out)
    assert out.shape == (B, Cout, H, W), out.shape

    ref = reference_forward(x, aux, params)
    if not jnp.allclose(out, ref, atol=5e-3, rtol=5e-3):
        raise AssertionError(
            f"mismatch vs reference, max abs err {float(jnp.max(jnp.abs(out - ref)))}")

    # Also exercise the fully-lane-folded path (grid=(1,)) for coverage.
    out2 = jax.block_until_ready(decoder_forward(x, aux, params, images_per_step=B))
    if not jnp.allclose(out2, ref, atol=5e-3, rtol=5e-3):
        raise AssertionError("mismatch vs reference (batch fully folded on lanes)")

    print("KERNEL_OK")
</pallas_src>

<mosaic_0001>
module attributes {stable_mosaic.version = 11 : i64} {
  func.func @_decoder_kernel(%arg0: i32, %arg1: memref<1x8x256xf32, #tpu.memory_space<vmem>>, %arg2: memref<1x8x256xf32, #tpu.memory_space<vmem>>, %arg3: memref<16x8xf32, #tpu.memory_space<vmem>>, %arg4: memref<16x1xf32, #tpu.memory_space<vmem>>, %arg5: memref<8x1xf32, #tpu.memory_space<vmem>>, %arg6: memref<8x72xf32, #tpu.memory_space<vmem>>, %arg7: memref<8x1xf32, #tpu.memory_space<vmem>>, %arg8: memref<9x256xf32, #tpu.memory_space<vmem>>, %arg9: memref<1x8x256xf32, #tpu.memory_space<vmem>>) attributes {dimension_semantics = [#tpu.dimension_semantics<parallel>], iteration_bounds = array<i64: 2>, scalar_prefetch = 0 : i64, scratch_operands = 0 : i64, tpu.core_type = #tpu.core_type<tc>, window_params = [{transform_indices = @transform_0, window_bounds = array<i64: 1, 8, 256>}, {transform_indices = @transform_1, window_bounds = array<i64: 1, 8, 256>}, {pipeline_mode = #tpu.pipeline_mode<synchronous>, transform_indices = @transform_2, window_bounds = array<i64: 16, 8>}, {pipeline_mode = #tpu.pipeline_mode<synchronous>, transform_indices = @transform_3, window_bounds = array<i64: 16, 1>}, {pipeline_mode = #tpu.pipeline_mode<synchronous>, transform_indices = @transform_4, window_bounds = array<i64: 8, 1>}, {pipeline_mode = #tpu.pipeline_mode<synchronous>, transform_indices = @transform_5, window_bounds = array<i64: 8, 72>}, {pipeline_mode = #tpu.pipeline_mode<synchronous>, transform_indices = @transform_6, window_bounds = array<i64: 8, 1>}, {pipeline_mode = #tpu.pipeline_mode<synchronous>, transform_indices = @transform_7, window_bounds = array<i64: 9, 256>}, {transform_indices = @transform_8, window_bounds = array<i64: 1, 8, 256>}]} {
    %c0 = arith.constant 0 : index
    %c0_0 = arith.constant 0 : index
    %c0_1 = arith.constant 0 : index
    %0 = vector.load %arg1[%c0, %c0_0, %c0_1] : memref<1x8x256xf32, #tpu.memory_space<vmem>>, vector<1x8x256xf32>
    %1 = vector.shape_cast %0 : vector<1x8x256xf32> to vector<8x256xf32>
    %c0_2 = arith.constant 0 : index
    %c0_3 = arith.constant 0 : index
    %c0_4 = arith.constant 0 : index
    %2 = vector.load %arg2[%c0_2, %c0_3, %c0_4] : memref<1x8x256xf32, #tpu.memory_space<vmem>>, vector<1x8x256xf32>
    %3 = vector.shape_cast %2 : vector<1x8x256xf32> to vector<8x256xf32>
    %c0_5 = arith.constant 0 : index
    %c0_6 = arith.constant 0 : index
    %4 = vector.load %arg3[%c0_5, %c0_6] : memref<16x8xf32, #tpu.memory_space<vmem>>, vector<16x8xf32>
    %cst = arith.constant dense<0.000000e+00> : vector<16x256xf32>
    %5 = tpu.matmul %4, %3, %cst {dimension_numbers = #tpu.dot_dimension_numbers<[1], [0], [0], [1], [0, 0, 1, 1], [], []>} : vector<16x8xf32>, vector<8x256xf32>, vector<16x256xf32> -> vector<16x256xf32>
    %c0_7 = arith.constant 0 : index
    %c0_8 = arith.constant 0 : index
    %6 = vector.load %arg4[%c0_7, %c0_8] : memref<16x1xf32, #tpu.memory_space<vmem>>, vector<16x1xf32>
    %7 = vector.broadcast %6 : vector<16x1xf32> to vector<16x256xf32>
    %8 = arith.addf %5, %7 : vector<16x256xf32>
    %9 = vector.extract_strided_slice %8 {offsets = [0, 0], sizes = [8, 256], strides = [1, 1]} : vector<16x256xf32> to vector<8x256xf32>
    %10 = vector.extract_strided_slice %8 {offsets = [8, 0], sizes = [1, 256], strides = [1, 1]} : vector<16x256xf32> to vector<1x256xf32>
    %c0_9 = arith.constant 0 : index
    %c0_10 = arith.constant 0 : index
    %11 = vector.load %arg5[%c0_9, %c0_10] : memref<8x1xf32, #tpu.memory_space<vmem>>, vector<8x1xf32>
    %12 = vector.broadcast %11 : vector<8x1xf32> to vector<8x256xf32>
    %13 = arith.mulf %12, %1 : vector<8x256xf32>
    %cst_11 = arith.constant dense<0.000000e+00> : vector<256xf32>
    %14 = vector.multi_reduction <add>, %13, %cst_11 [0] : vector<8x256xf32> to vector<256xf32>
    %15 = vector.shape_cast %14 : vector<256xf32> to vector<1x256xf32>
    %16 = arith.addf %15, %10 : vector<1x256xf32>
    %17 = arith.negf %16 : vector<1x256xf32>
    %18 = math.exp %17 : vector<1x256xf32>
    %cst_12 = arith.constant 1.000000e+00 : f32
    %19 = vector.broadcast %cst_12 : f32 to vector<1x256xf32>
    %20 = arith.addf %19, %18 : vector<1x256xf32>
    %21 = arith.divf %19, %20 : vector<1x256xf32>
    %22 = arith.subf %1, %9 : vector<8x256xf32>
    %23 = vector.broadcast %21 : vector<1x256xf32> to vector<8x256xf32>
    %24 = arith.mulf %23, %22 : vector<8x256xf32>
    %25 = arith.addf %9, %24 : vector<8x256xf32>
    %c17_i32 = arith.constant 17 : i32
    %26 = tpu.dynamic_rotate %25 by %c17_i32 dim 1 : vector<8x256xf32>, i32 -> vector<8x256xf32>
    %c0_13 = arith.constant 0 : index
    %c0_14 = arith.constant 0 : index
    %27 = vector.load %arg8[%c0_13, %c0_14] : memref<9x256xf32, #tpu.memory_space<vmem>>, vector<1x256xf32>
    %28 = vector.broadcast %27 : vector<1x256xf32> to vector<8x256xf32>
    %29 = arith.mulf %26, %28 : vector<8x256xf32>
    %c16_i32 = arith.constant 16 : i32
    %30 = tpu.dynamic_rotate %25 by %c16_i32 dim 1 : vector<8x256xf32>, i32 -> vector<8x256xf32>
    %c1 = arith.constant 1 : index
    %c0_15 = arith.constant 0 : index
    %31 = vector.load %arg8[%c1, %c0_15] : memref<9x256xf32, #tpu.memory_space<vmem>>, vector<1x256xf32>
    %32 = vector.broadcast %31 : vector<1x256xf32> to vector<8x256xf32>
    %33 = arith.mulf %30, %32 : vector<8x256xf32>
    %c15_i32 = arith.constant 15 : i32
    %34 = tpu.dynamic_rotate %25 by %c15_i32 dim 1 : vector<8x256xf32>, i32 -> vector<8x256xf32>
    %c2 = arith.constant 2 : index
    %c0_16 = arith.constant 0 : index
    %35 = vector.load %arg8[%c2, %c0_16] : memref<9x256xf32, #tpu.memory_space<vmem>>, vector<1x256xf32>
    %36 = vector.broadcast %35 : vector<1x256xf32> to vector<8x256xf32>
    %37 = arith.mulf %34, %36 : vector<8x256xf32>
    %c1_i32 = arith.constant 1 : i32
    %38 = tpu.dynamic_rotate %25 by %c1_i32 dim 1 : vector<8x256xf32>, i32 -> vector<8x256xf32>
    %c3 = arith.constant 3 : index
    %c0_17 = arith.constant 0 : index
    %39 = vector.load %arg8[%c3, %c0_17] : memref<9x256xf32, #tpu.memory_space<vmem>>, vector<1x256xf32>
    %40 = vector.broadcast %39 : vector<1x256xf32> to vector<8x256xf32>
    %41 = arith.mulf %38, %40 : vector<8x256xf32>
    %c255_i32 = arith.constant 255 : i32
    %42 = tpu.dynamic_rotate %25 by %c255_i32 dim 1 : vector<8x256xf32>, i32 -> vector<8x256xf32>
    %c5 = arith.constant 5 : index
    %c0_18 = arith.constant 0 : index
    %43 = vector.load %arg8[%c5, %c0_18] : memref<9x256xf32, #tpu.memory_space<vmem>>, vector<1x256xf32>
    %44 = vector.broadcast %43 : vector<1x256xf32> to vector<8x256xf32>
    %45 = arith.mulf %42, %44 : vector<8x256xf32>
    %c241_i32 = arith.constant 241 : i32
    %46 = tpu.dynamic_rotate %25 by %c241_i32 dim 1 : vector<8x256xf32>, i32 -> vector<8x256xf32>
    %c6 = arith.constant 6 : index
    %c0_19 = arith.constant 0 : index
    %47 = vector.load %arg8[%c6, %c0_19] : memref<9x256xf32, #tpu.memory_space<vmem>>, vector<1x256xf32>
    %48 = vector.broadcast %47 : vector<1x256xf32> to vector<8x256xf32>
    %49 = arith.mulf %46, %48 : vector<8x256xf32>
    %c240_i32 = arith.constant 240 : i32
    %50 = tpu.dynamic_rotate %25 by %c240_i32 dim 1 : vector<8x256xf32>, i32 -> vector<8x256xf32>
    %c7 = arith.constant 7 : index
    %c0_20 = arith.constant 0 : index
    %51 = vector.load %arg8[%c7, %c0_20] : memref<9x256xf32, #tpu.memory_space<vmem>>, vector<1x256xf32>
    %52 = vector.broadcast %51 : vector<1x256xf32> to vector<8x256xf32>
    %53 = arith.mulf %50, %52 : vector<8x256xf32>
    %c239_i32 = arith.constant 239 : i32
    %54 = tpu.dynamic_rotate %25 by %c239_i32 dim 1 : vector<8x256xf32>, i32 -> vector<8x256xf32>
    %c8 = arith.constant 8 : index
    %c0_21 = arith.constant 0 : index
    %55 = vector.load %arg8[%c8, %c0_21] : memref<9x256xf32, #tpu.memory_space<vmem>>, vector<1x256xf32>
    %56 = vector.broadcast %55 : vector<1x256xf32> to vector<8x256xf32>
    %57 = arith.mulf %54, %56 : vector<8x256xf32>
    %58 = tpu.concatenate %29, %33, %37, %41, %25, %45, %49, %53, %57 in 0 : vector<8x256xf32>, vector<8x256xf32>, vector<8x256xf32>, vector<8x256xf32>, vector<8x256xf32>, vector<8x256xf32>, vector<8x256xf32>, vector<8x256xf32>, vector<8x256xf32> -> vector<72x256xf32>
    %c0_22 = arith.constant 0 : index
    %c0_23 = arith.constant 0 : index
    %59 = vector.load %arg6[%c0_22, %c0_23] : memref<8x72xf32, #tpu.memory_space<vmem>>, vector<8x72xf32>
    %cst_24 = arith.constant dense<0.000000e+00> : vector<8x256xf32>
    %60 = tpu.matmul %59, %58, %cst_24 {dimension_numbers = #tpu.dot_dimension_numbers<[1], [0], [0], [1], [0, 0, 1, 1], [], []>} : vector<8x72xf32>, vector<72x256xf32>, vector<8x256xf32> -> vector<8x256xf32>
    %c0_25 = arith.constant 0 : index
    %c0_26 = arith.constant 0 : index
    %61 = vector.load %arg7[%c0_25, %c0_26] : memref<8x1xf32, #tpu.memory_space<vmem>>, vector<8x1xf32>
    %62 = vector.broadcast %61 : vector<8x1xf32> to vector<8x256xf32>
    %63 = arith.addf %60, %62 : vector<8x256xf32>
    %c0_27 = arith.constant 0 : index
    %c0_28 = arith.constant 0 : index
    %c0_29 = arith.constant 0 : index
    %64 = vector.load %arg9[%c0_27, %c0_28, %c0_29] : memref<1x8x256xf32, #tpu.memory_space<vmem>>, vector<1x8x256xf32>
    %65 = vector.shape_cast %64 : vector<1x8x256xf32> to vector<8x256xf32>
    %66 = vector.shape_cast %63 : vector<8x256xf32> to vector<1x8x256xf32>
    tpu.vector_store %arg9[%c0_27, %c0_28, %c0_29], %66 {strides = array<i32>} : memref<1x8x256xf32, #tpu.memory_space<vmem>>, vector<1x8x256xf32>,
    return
  }
  func.func @transform_0(%arg0: i32) -> (i32, i32, i32) {
    %c0_i32 = arith.constant 0 : i32
    %c0_i32_0 = arith.constant 0 : i32
    %c0_i32_1 = arith.constant 0 : i32
    return %arg0, %c0_i32, %c0_i32_0 : i32, i32, i32
  }
  func.func @transform_1(%arg0: i32) -> (i32, i32, i32) {
    %c0_i32 = arith.constant 0 : i32
    %c0_i32_0 = arith.constant 0 : i32
    %c0_i32_1 = arith.constant 0 : i32
    return %arg0, %c0_i32, %c0_i32_0 : i32, i32, i32
  }
  func.func @transform_2(%arg0: i32) -> (i32, i32) {
    %c0_i32 = arith.constant 0 : i32
    %c0_i32_0 = arith.constant 0 : i32
    %c0_i32_1 = arith.constant 0 : i32
    return %c0_i32, %c0_i32_0 : i32, i32
  }
  func.func @transform_3(%arg0: i32) -> (i32, i32) {
    %c0_i32 = arith.constant 0 : i32
    %c0_i32_0 = arith.constant 0 : i32
    %c0_i32_1 = arith.constant 0 : i32
    return %c0_i32, %c0_i32_0 : i32, i32
  }
  func.func @transform_4(%arg0: i32) -> (i32, i32) {
    %c0_i32 = arith.constant 0 : i32
    %c0_i32_0 = arith.constant 0 : i32
    %c0_i32_1 = arith.constant 0 : i32
    return %c0_i32, %c0_i32_0 : i32, i32
  }
  func.func @transform_5(%arg0: i32) -> (i32, i32) {
    %c0_i32 = arith.constant 0 : i32
    %c0_i32_0 = arith.constant 0 : i32
    %c0_i32_1 = arith.constant 0 : i32
    return %c0_i32, %c0_i32_0 : i32, i32
  }
  func.func @transform_6(%arg0: i32) -> (i32, i32) {
    %c0_i32 = arith.constant 0 : i32
    %c0_i32_0 = arith.constant 0 : i32
    %c0_i32_1 = arith.constant 0 : i32
    return %c0_i32, %c0_i32_0 : i32, i32
  }
  func.func @transform_7(%arg0: i32) -> (i32, i32) {
    %c0_i32 = arith.constant 0 : i32
    %c0_i32_0 = arith.constant 0 : i32
    %c0_i32_1 = arith.constant 0 : i32
    return %c0_i32, %c0_i32_0 : i32, i32
  }
  func.func @transform_8(%arg0: i32) -> (i32, i32, i32) {
    %c0_i32 = arith.constant 0 : i32
    %c0_i32_0 = arith.constant 0 : i32
    %c0_i32_1 = arith.constant 0 : i32
    return %arg0, %c0_i32, %c0_i32_0 : i32, i32, i32
  }
}

</mosaic_0001>

<llo_original>
// kernel: tpu_custom_call.1
$region0: #{tpu_custom_call.1}
  #allocation0 [shape = 'u32[]', space=smem, size = 0x4, offset = 0x4, fixed_abs, tag = 'smem constant byte address 0x4 - core index']
  #allocation1 [shape = 'u32[144,128]{1,0:T(1,128)}', space=vmem, size = 0x12000, scoped, tag = 'internal scratch']
  %s0 = inlined_call_operand.vmem [shape: f32[2,8,256], index: 0, kind: input, shape index: {}]
  %s1 = inlined_call_operand.hbm [shape: f32[2,8,256], index: 1, kind: input, shape index: {}]
  %s2 = inlined_call_operand.vmem [shape: f32[16,8], index: 2, kind: input, shape index: {}]
  %s3 = inlined_call_operand.vmem [shape: f32[16,1], index: 3, kind: input, shape index: {}]
  %s4 = inlined_call_operand.vmem [shape: f32[8,1], index: 4, kind: input, shape index: {}]
  %s5 = inlined_call_operand.hbm [shape: f32[8,72], index: 5, kind: input, shape index: {}]
  %s6 = inlined_call_operand.vmem [shape: f32[8,1], index: 6, kind: input, shape index: {}]
  %s7 = inlined_call_operand.vmem [shape: f32[9,256], index: 7, kind: input, shape index: {}]
  %s8 = inlined_call_operand.hbm [shape: f32[2,8,256], index: 8, kind: output, shape index: {}]
  %s9 = sld [smem:[#allocation0]]
  $region73: #{tpu_custom_call.1} parent=0
    _
  %s11 = ssub.s32 1, %s9
  %s12 = scalar_select 0, %s11, %s9
  $region1: #{tpu_custom_call.1} parent=0
    #allocation2 [shape = 'u8[16384]{0}', space=vmem, size = 0x4000, scoped, tag = 'input window, operand 1']
    #allocation3 [shape = 's32[2]{0}', space=sflag, size = 0x8, scoped, tag = 'scoped memory for tpu_custom_call.1']
    #allocation4 [shape = 's32[2]{0}', space=sflag, size = 0x8, scoped, tag = 'scoped memory for tpu_custom_call.1']
    #allocation5 [shape = 'u8[4096]{0}', space=vmem, size = 0x1000, scoped, tag = 'input window, operand 5, single buffered']
    #allocation6 [shape = 's32[1]{0}', space=sflag, size = 0x4, scoped, tag = 'scoped memory for tpu_custom_call.1']
    #allocation7 [shape = 'u8[16384]{0}', space=vmem, size = 0x4000, scoped, tag = 'output window, operand 0']
    %13 = vsyncpa [#allocation3], 0
    %s14 = scalar_lea.sflag [#allocation3], 1
    %15 = vsyncpa %s14, 0
    %16 = vsyncpa [#allocation6], 0
    %17 = vsyncpa [#allocation4], 0
    %s18 = scalar_lea.sflag [#allocation4], 1
    %19 = vsyncpa %s18, 0
    loop: start=0, step=1, limit=4
    $region2: #{tpu_custom_call.1} parent=1 // loop_pre_header
      _
    $region3: #{tpu_custom_call.1} parent=1 // loop_header
      %s21 = sphi 0, %s25
      %p22 = scmp.ge.s32.totalorder %s21, 4
      %s31 = sphi 0, %s33
      %s34 = sphi 0, %s31
      %s35 = sphi 0, %s34
      %s51 = sphi 0, %s35
      %s57 = sphi 0, %s59
      %s60 = sphi 0, %s57
      %s61 = sphi 0, %s60
      %s77 = sphi 0, %s61
      %s81 = sphi 0, %s81
      %s83 = sphi 0, %s81
      %s84 = sphi 0, %s83
      %s98 = sphi 0, %s84
      %s102 = sphi 0, %s102
      %s104 = sphi 0, %s102
      %s105 = sphi 0, %s104
      %s119 = sphi 0, %s105
      %s123 = sphi 0, %s123
      %s125 = sphi 0, %s123
      %s126 = sphi 0, %s125
      %s140 = sphi 0, %s126
      %s144 = sphi 0, %s144
      %s146 = sphi 0, %s144
      %s147 = sphi 0, %s146
      %s161 = sphi 0, %s147
      %s165 = sphi 0, %s165
      %s167 = sphi 0, %s165
      %s168 = sphi 0, %s167
      %s182 = sphi 0, %s168
      %s186 = sphi 0, %s186
      %s188 = sphi 0, %s186
      %s189 = sphi 0, %s188
      %s203 = sphi 0, %s189
      %s209 = sphi 0, %s211
      %s212 = sphi 0, %s209
      %s213 = sphi 0, %s212
      %s229 = sphi 0, %s213
    $region4: #{tpu_custom_call.1} parent=1 // loop_header_branch
      %24 = sbr.rel (%p22) target = $region8
    $region5: #{tpu_custom_call.1} parent=1 // loop_body
      %s26 = ssub.s32 %s21, 1
      %s27 = ssub.s32 %s21, 2
      %s28 = sadd.s32 %s21, 1
      %s29 = ssub.s32 %s21, %s28
      %p30 = scmp.eq.s32.totalorder %s29, 0
      %s32 = sadd.s32 %s31, 1
      %s33 = scalar_select %p30, %s31, %s32
      %p36 = pneg %p30
      %p37 = scmp.eq.s32.totalorder %s21, 1
      %p38 = por %p36, %p37
      %p39 = scmp.ne.s32.totalorder %s31, %s34
      %p40 = scmp.eq.s32.totalorder %s21, 0
      %p41 = por %p39, %p40
      %p42 = scmp.ne.s32.totalorder %s31, %s34
      %p43 = scmp.eq.s32.totalorder %s26, 1
      %p44 = por %p42, %p43
      %p45 = scmp.ne.s32.totalorder %s34, %s35
      %p46 = scmp.eq.s32.totalorder %s26, 0
      %p47 = por %p45, %p46
      %p48 = scmp.ne.s32.totalorder %s34, %s35
      %p49 = scmp.eq.s32.totalorder %s27, 1
      %p50 = por %p48, %p49
      %p52 = scmp.ne.s32.totalorder %s35, %s51
      %p53 = scmp.eq.s32.totalorder %s27, 0
      %p54 = por %p52, %p53
      %s55 = ssub.s32 %s21, %s28
      %p56 = scmp.eq.s32.totalorder %s55, 0
      %s58 = sadd.s32 %s57, 1
      %s59 = scalar_select %p56, %s57, %s58
      %p62 = pneg %p56
      %p63 = scmp.eq.s32.totalorder %s21, 1
      %p64 = por %p62, %p63
      %p65 = scmp.ne.s32.totalorder %s57, %s60
      %p66 = scmp.eq.s32.totalorder %s21, 0
      %p67 = por %p65, %p66
      %p68 = scmp.ne.s32.totalorder %s57, %s60
      %p69 = scmp.eq.s32.totalorder %s26, 1
      %p70 = por %p68, %p69
      %p71 = scmp.ne.s32.totalorder %s60, %s61
      %p72 = scmp.eq.s32.totalorder %s26, 0
      %p73 = por %p71, %p72
      %p74 = scmp.ne.s32.totalorder %s60, %s61
      %p75 = scmp.eq.s32.totalorder %s27, 1
      %p76 = por %p74, %p75
      %p78 = scmp.ne.s32.totalorder %s61, %s77
      %p79 = scmp.eq.s32.totalorder %s27, 0
      %p80 = por %p78, %p79
      %s82 = sadd.s32 %s81, 1
      %p85 = scmp.eq.s32.totalorder %s21, 1
      %p86 = scmp.ne.s32.totalorder %s81, %s83
      %p87 = scmp.eq.s32.totalorder %s21, 0
      %p88 = por %p86, %p87
      %p89 = scmp.ne.s32.totalorder %s81, %s83
      %p90 = scmp.eq.s32.totalorder %s26, 1
      %p91 = por %p89, %p90
      %p92 = scmp.ne.s32.totalorder %s83, %s84
      %p93 = scmp.eq.s32.totalorder %s26, 0
      %p94 = por %p92, %p93
      %p95 = scmp.ne.s32.totalorder %s83, %s84
      %p96 = scmp.eq.s32.totalorder %s27, 1
      %p97 = por %p95, %p96
      %p99 = scmp.ne.s32.totalorder %s84, %s98
      %p100 = scmp.eq.s32.totalorder %s27, 0
      %p101 = por %p99, %p100
      %s103 = sadd.s32 %s102, 1
      %p106 = scmp.eq.s32.totalorder %s21, 1
      %p107 = scmp.ne.s32.totalorder %s102, %s104
      %p108 = scmp.eq.s32.totalorder %s21, 0
      %p109 = por %p107, %p108
      %p110 = scmp.ne.s32.totalorder %s102, %s104
      %p111 = scmp.eq.s32.totalorder %s26, 1
      %p112 = por %p110, %p111
      %p113 = scmp.ne.s32.totalorder %s104, %s105
      %p114 = scmp.eq.s32.totalorder %s26, 0
      %p115 = por %p113, %p114
      %p116 = scmp.ne.s32.totalorder %s104, %s105
      %p117 = scmp.eq.s32.totalorder %s27, 1
      %p118 = por %p116, %p117
      %p120 = scmp.ne.s32.totalorder %s105, %s119
      %p121 = scmp.eq.s32.totalorder %s27, 0
      %p122 = por %p120, %p121
      %s124 = sadd.s32 %s123, 1
      %p127 = scmp.eq.s32.totalorder %s21, 1
      %p128 = scmp.ne.s32.totalorder %s123, %s125
      %p129 = scmp.eq.s32.totalorder %s21, 0
      %p130 = por %p128, %p129
      %p131 = scmp.ne.s32.totalorder %s123, %s125
      %p132 = scmp.eq.s32.totalorder %s26, 1
      %p133 = por %p131, %p132
      %p134 = scmp.ne.s32.totalorder %s125, %s126
      %p135 = scmp.eq.s32.totalorder %s26, 0
      %p136 = por %p134, %p135
      %p137 = scmp.ne.s32.totalorder %s125, %s126
      %p138 = scmp.eq.s32.totalorder %s27, 1
      %p139 = por %p137, %p138
      %p141 = scmp.ne.s32.totalorder %s126, %s140
      %p142 = scmp.eq.s32.totalorder %s27, 0
      %p143 = por %p141, %p142
      %s145 = sadd.s32 %s144, 1
      %p148 = scmp.eq.s32.totalorder %s21, 1
      %p149 = scmp.ne.s32.totalorder %s144, %s146
      %p150 = scmp.eq.s32.totalorder %s21, 0
      %p151 = por %p149, %p150
      %p152 = scmp.ne.s32.totalorder %s144, %s146
      %p153 = scmp.eq.s32.totalorder %s26, 1
      %p154 = por %p152, %p153
      %p155 = scmp.ne.s32.totalorder %s146, %s147
      %p156 = scmp.eq.s32.totalorder %s26, 0
      %p157 = por %p155, %p156
      %p158 = scmp.ne.s32.totalorder %s146, %s147
      %p159 = scmp.eq.s32.totalorder %s27, 1
      %p160 = por %p158, %p159
      %p162 = scmp.ne.s32.totalorder %s147, %s161
      %p163 = scmp.eq.s32.totalorder %s27, 0
      %p164 = por %p162, %p163
      %s166 = sadd.s32 %s165, 1
      %p169 = scmp.eq.s32.totalorder %s21, 1
      %p170 = scmp.ne.s32.totalorder %s165, %s167
      %p171 = scmp.eq.s32.totalorder %s21, 0
      %p172 = por %p170, %p171
      %p173 = scmp.ne.s32.totalorder %s165, %s167
      %p174 = scmp.eq.s32.totalorder %s26, 1
      %p175 = por %p173, %p174
      %p176 = scmp.ne.s32.totalorder %s167, %s168
      %p177 = scmp.eq.s32.totalorder %s26, 0
      %p178 = por %p176, %p177
      %p179 = scmp.ne.s32.totalorder %s167, %s168
      %p180 = scmp.eq.s32.totalorder %s27, 1
      %p181 = por %p179, %p180
      %p183 = scmp.ne.s32.totalorder %s168, %s182
      %p184 = scmp.eq.s32.totalorder %s27, 0
      %p185 = por %p183, %p184
      %s187 = sadd.s32 %s186, 1
      %p190 = scmp.eq.s32.totalorder %s21, 1
      %p191 = scmp.ne.s32.totalorder %s186, %s188
      %p192 = scmp.eq.s32.totalorder %s21, 0
      %p193 = por %p191, %p192
      %p194 = scmp.ne.s32.totalorder %s186, %s188
      %p195 = scmp.eq.s32.totalorder %s26, 1
      %p196 = por %p194, %p195
      %p197 = scmp.ne.s32.totalorder %s188, %s189
      %p198 = scmp.eq.s32.totalorder %s26, 0
      %p199 = por %p197, %p198
      %p200 = scmp.ne.s32.totalorder %s188, %s189
      %p201 = scmp.eq.s32.totalorder %s27, 1
      %p202 = por %p200, %p201
      %p204 = scmp.ne.s32.totalorder %s189, %s203
      %p205 = scmp.eq.s32.totalorder %s27, 0
      %p206 = por %p204, %p205
      %s207 = ssub.s32 %s21, %s28
      %p208 = scmp.eq.s32.totalorder %s207, 0
      %s210 = sadd.s32 %s209, 1
      %s211 = scalar_select %p208, %s209, %s210
      %p214 = pneg %p208
      %p215 = scmp.eq.s32.totalorder %s21, 1
      %p216 = por %p214, %p215
      %p217 = scmp.ne.s32.totalorder %s209, %s212
      %p218 = scmp.eq.s32.totalorder %s21, 0
      %p219 = por %p217, %p218
      %p220 = scmp.ne.s32.totalorder %s209, %s212
      %p221 = scmp.eq.s32.totalorder %s26, 1
      %p222 = por %p220, %p221
      %p223 = scmp.ne.s32.totalorder %s212, %s213
      %p224 = scmp.eq.s32.totalorder %s26, 0
      %p225 = por %p223, %p224
      %p226 = scmp.ne.s32.totalorder %s212, %s213
      %p227 = scmp.eq.s32.totalorder %s27, 1
      %p228 = por %p226, %p227
      %p230 = scmp.ne.s32.totalorder %s213, %s229
      %p231 = scmp.eq.s32.totalorder %s27, 0
      %p232 = por %p230, %p231
      %p233 = scmp.le.s32.totalorder 1, %s21
      %p234 = scmp.lt.s32.totalorder %s21, 3
      %p235 = pnand %p233, %p234
      %p236 = pneg %p235
      // Predicated region
      $region9: #{tpu_custom_call.1} parent=5 // pred_check
        _
      $region10: #{tpu_custom_call.1} parent=5 // pred_check_branch
        %238 = sbr.rel (%p235) target = $region12
      $region11: #{tpu_custom_call.1} parent=5 // pred_region
        %s239 = ssub.s32 %s21, 1
        // Predicated region
        $region13: #{tpu_custom_call.1} parent=11 // pred_check
          %p240 = pneg %p94
        $region14: #{tpu_custom_call.1} parent=11 // pred_check_branch
          %242 = sbr.rel (%p240) target = $region16
        $region15: #{tpu_custom_call.1} parent=11 // pred_region
          _
        $region16: #{tpu_custom_call.1} parent=11 // pred_fallthru
          _
        // Predicated region
        $region17: #{tpu_custom_call.1} parent=11 // pred_check
          %p243 = pneg %p115
        $region18: #{tpu_custom_call.1} parent=11 // pred_check_branch
          %245 = sbr.rel (%p243) target = $region20
        $region19: #{tpu_custom_call.1} parent=11 // pred_region
          _
        $region20: #{tpu_custom_call.1} parent=11 // pred_fallthru
          _
        // Predicated region
        $region21: #{tpu_custom_call.1} parent=11 // pred_check
          %p246 = pneg %p136
        $region22: #{tpu_custom_call.1} parent=11 // pred_check_branch
          %248 = sbr.rel (%p246) target = $region24
        $region23: #{tpu_custom_call.1} parent=11 // pred_region
          _
        $region24: #{tpu_custom_call.1} parent=11 // pred_fallthru
          _
        // Predicated region
        $region25: #{tpu_custom_call.1} parent=11 // pred_check
          %p249 = pneg %p157
        $region26: #{tpu_custom_call.1} parent=11 // pred_check_branch
          %251 = sbr.rel (%p249) target = $region28
        $region27: #{tpu_custom_call.1} parent=11 // pred_region
          %s253 = ssub.s32 128, 128
          %254 = vsyncadd [#allocation6], %s253
          %s256 = sshll.u32 [#allocation5], 4
          %s257 = int_to_ptr.vmem [resolvable:$true] %s256
          %259 = dma.hbm_to_vmem [thread:$0]  %s5, 128, %s257, [#allocation6]
        $region28: #{tpu_custom_call.1} parent=11 // pred_fallthru
          _
        // Predicated region
        $region29: #{tpu_custom_call.1} parent=11 // pred_check
          %p260 = pneg %p178
        $region30: #{tpu_custom_call.1} parent=11 // pred_check_branch
          %262 = sbr.rel (%p260) target = $region32
        $region31: #{tpu_custom_call.1} parent=11 // pred_region
          _
        $region32: #{tpu_custom_call.1} parent=11 // pred_fallthru
          _
        // Predicated region
        $region33: #{tpu_custom_call.1} parent=11 // pred_check
          %p263 = pneg %p199
        $region34: #{tpu_custom_call.1} parent=11 // pred_check_branch
          %265 = sbr.rel (%p263) target = $region36
        $region35: #{tpu_custom_call.1} parent=11 // pred_region
          _
        $region36: #{tpu_custom_call.1} parent=11 // pred_fallthru
          _
      $region12: #{tpu_custom_call.1} parent=5 // pred_fallthru
        _
      %p266 = scmp.lt.s32.totalorder %s21, 2
      // Predicated region
      $region37: #{tpu_custom_call.1} parent=5 // pred_check
        %p267 = pneg %p266
      $region38: #{tpu_custom_call.1} parent=5 // pred_check_branch
        %269 = sbr.rel (%p267) target = $region40
      $region39: #{tpu_custom_call.1} parent=5 // pred_region
        // Predicated region
        $region41: #{tpu_custom_call.1} parent=39 // pred_check
          %p270 = pneg %p41
        $region42: #{tpu_custom_call.1} parent=39 // pred_check_branch
          %272 = sbr.rel (%p270) target = $region44
        $region43: #{tpu_custom_call.1} parent=39 // pred_region
          %p273 = scmp.lt.s32.totalorder %s21, 1
          %s274 = scalar_select %p273, %s21, 1
          %s275 = smul.addr %s274, 2
          %s276 = smul.addr %s275, 8
          %s277 = scalar_lea.vmem %s0, %s276
        $region44: #{tpu_custom_call.1} parent=39 // pred_fallthru
          _
        // Predicated region
        $region45: #{tpu_custom_call.1} parent=39 // pred_check
          %p278 = pneg %p67
        $region46: #{tpu_custom_call.1} parent=39 // pred_check_branch
          %280 = sbr.rel (%p278) target = $region48
        $region47: #{tpu_custom_call.1} parent=39 // pred_region
          %s281 = sand.u32 %s57, 1
          %s282 = scalar_lea.sflag [#allocation3], %s281
          %s283 = sand.u32 %s57, 1
          %s284 = smul.addr %s283, 16
          %s285 = scalar_lea.vmem [#allocation2], %s284
          %s287 = ssub.s32 256, 256
          %288 = vsyncadd %s282, %s287
          %s289 = smul.addr %s21, 2
          %s290 = smul.addr %s289, 128
          %s291 = scalar_lea.hbm %s1, %s290
          %s293 = sshll.u32 %s285, 4
          %s294 = int_to_ptr.vmem [resolvable:$true] %s293
          %296 = dma.hbm_to_vmem [thread:$0]  %s291, 256, %s294, %s282
        $region48: #{tpu_custom_call.1} parent=39 // pred_fallthru
          _
      $region40: #{tpu_custom_call.1} parent=5 // pred_fallthru
        _
      %p297 = scmp.le.s32.totalorder 1, %s21
      %p298 = scmp.lt.s32.totalorder %s21, 3
      %p299 = pnand %p297, %p298
      %p300 = pneg %p299
      // Predicated region
      $region49: #{tpu_custom_call.1} parent=5 // pred_check
        _
      $region50: #{tpu_custom_call.1} parent=5 // pred_check_branch
        %302 = sbr.rel (%p299) target = $region52
      $region51: #{tpu_custom_call.1} parent=5 // pred_region
        %s303 = ssub.s32 %s21, 1
        %s304 = sand.u32 %s60, 1
        %s305 = scalar_lea.sflag [#allocation3], %s304
        %s306 = sand.u32 %s60, 1
        %s307 = smul.addr %s306, 16
        %s308 = scalar_lea.vmem [#allocation2], %s307
        // Predicated region
        $region53: #{tpu_custom_call.1} parent=51 // pred_check
          %p309 = pneg %p73
        $region54: #{tpu_custom_call.1} parent=51 // pred_check_branch
          %311 = sbr.rel (%p309) target = $region56
        $region55: #{tpu_custom_call.1} parent=51 // pred_region
          %312 = dma.done %s305, 256
        $region56: #{tpu_custom_call.1} parent=51 // pred_fallthru
          _
        // Predicated region
        $region57: #{tpu_custom_call.1} parent=51 // pred_check
          %p313 = pneg %p157
        $region58: #{tpu_custom_call.1} parent=51 // pred_check_branch
          %315 = sbr.rel (%p313) target = $region60
        $region59: #{tpu_custom_call.1} parent=51 // pred_region
          %316 = dma.done [#allocation6], 128
        $region60: #{tpu_custom_call.1} parent=51 // pred_fallthru
          _
        %p317 = scmp.lt.s32.totalorder %s26, 1
        %s318 = scalar_select %p317, %s26, 1
        %s319 = smul.addr %s318, 2
        %s320 = smul.addr %s319, 8
        %s321 = scalar_lea.vmem %s0, %s320
        %p322 = pneg %p47
        %p323 = pneg %p44
        %s324 = sand.u32 %s60, 1
        %s325 = scalar_lea.sflag [#allocation3], %s324
        %s326 = sand.u32 %s60, 1
        %s327 = smul.addr %s326, 16
        %s328 = scalar_lea.vmem [#allocation2], %s327
        %p329 = pneg %p73
        %p330 = pneg %p70
        %p331 = pneg %p94
        %p332 = pneg %p91
        %p333 = pneg %p115
        %p334 = pneg %p112
        %p335 = pneg %p136
        %p336 = pneg %p133
        %p337 = pneg %p157
        %p338 = pneg %p154
        %p339 = pneg %p178
        %p340 = pneg %p175
        %p341 = pneg %p199
        %p342 = pneg %p196
        %p343 = pneg %p225
        %p344 = pneg %p222
        %s345 = sand.u32 %s212, 1
        %s346 = scalar_lea.sflag [#allocation4], %s345
        %s347 = sand.u32 %s212, 1
        %s348 = smul.addr %s347, 16
        %s349 = scalar_lea.vmem [#allocation7], %s348
        %p350 = scmp.lt.s32.totalorder %s26, 1
        %s351 = scalar_select %p350, %s26, 1
        %s352 = smul.addr %s351, 2
        %s353 = smul.addr %s352, 8
        %s354 = scalar_lea.vmem %s0, %s353
        %v355 = vld [vmem:[%s354] sm:$0xff]
        %v356 = vld [vmem:[%s354 + $0x8] sm:$0xff]
        %v357 = vld [vmem:[%s308] sm:$0xff]
        %v358 = vld [vmem:[%s308 + $0x8] sm:$0xff]
        %v359 = vld [vmem:[%s2] sm:$0xff]
        %v360 = vld [vmem:[%s2 + $0x8] sm:$0xff]
        %v361 = vld [vmem:[%s3] sm:$0xff]
        %v362 = vld [vmem:[%s3 + $0x8] sm:$0xff]
        %364 = vset.pattern.permute.xlu0 0
        %365 = vperm.xlu0 %364, %v361
        %v366 = vpop.permute.xlu0 %365
        %369 = vset.pattern.permute.xlu0 0
        %370 = vperm.xlu0 %369, %v362
        %v371 = vpop.permute.xlu0 %370
        %vm373 = vcmask 64512
        %v375 = vsel %vm373, %v359, 0
        %v378 = vsel %vm373, %v360, 0
        %380 = vmatprep.subr.mxu0 0.0
        %381 = vmatpush1.msra.mxu0 0.0
        %382 = vmatprep.subr.mxu0 0.0
        %383 = vmatpush1.msra.mxu0 0.0
        %384 = vmatprep.subr.mxu0 0.0
        %385 = vmatpush1.msra.mxu0 0.0
        %386 = vmatprep.subr.mxu0 0.0
        %387 = vmatpush1.msra.mxu0 0.0
        %388 = vmatprep.subr.mxu0 0.0
        %389 = vmatpush1.msra.mxu0 0.0
        %390 = vmatprep.subr.mxu0 0.0
        %391 = vmatpush1.msra.mxu0 0.0
        %392 = vmatprep.subr.mxu0 0.0
        %393 = vmatpush1.msra.mxu0 0.0
        %394 = vmatprep.subr.mxu0 0.0
        %395 = vmatpush1.msra.mxu0 0.0
        %396 = vmatprep.subr.mxu0 0.0
        %397 = vmatpush1.msra.mxu0 0.0
        %398 = vmatprep.subr.mxu0 0.0
        %399 = vmatpush1.msra.mxu0 0.0
        %400 = vmatprep.subr.mxu0 0.0
        %401 = vmatpush1.msra.mxu0 0.0
        %402 = vmatprep.subr.mxu0 0.0
        %403 = vmatpush1.msra.mxu0 0.0
        %404 = vmatprep.subr.mxu0 0.0
        %405 = vmatpush1.msra.mxu0 0.0
        %406 = vmatprep.subr.mxu0 0.0
        %407 = vmatpush1.msra.mxu0 0.0
        %408 = vmatprep.subr.mxu0 0.0
        %409 = vmatpush1.msra.mxu0 0.0
        %410 = vmatprep.subr.mxu0 %v358
        %411 = vmatpush1.msra.mxu0 %v357
        %412 = vmatprep.subr.mxu0 0.0
        %413 = vmatpush2.msra.mxu0 0.0
        %414 = vmatprep.subr.mxu0 0.0
        %415 = vmatpush2.msra.mxu0 0.0
        %416 = vmatprep.subr.mxu0 0.0
        %417 = vmatpush2.msra.mxu0 0.0
        %418 = vmatprep.subr.mxu0 0.0
        %419 = vmatpush2.msra.mxu0 0.0
        %420 = vmatprep.subr.mxu0 0.0
        %421 = vmatpush2.msra.mxu0 0.0
        %422 = vmatprep.subr.mxu0 0.0
        %423 = vmatpush2.msra.mxu0 0.0
        %424 = vmatprep.subr.mxu0 0.0
        %425 = vmatpush2.msra.mxu0 0.0
        %426 = vmatprep.subr.mxu0 0.0
        %427 = vmatpush2.msra.mxu0 0.0
        %428 = vmatprep.subr.mxu0 0.0
        %429 = vmatpush2.msra.mxu0 0.0
        %430 = vmatprep.subr.mxu0 0.0
        %431 = vmatpush2.msra.mxu0 0.0
        %432 = vmatprep.subr.mxu0 0.0
        %433 = vmatpush2.msra.mxu0 0.0
        %434 = vmatprep.subr.mxu0 0.0
        %435 = vmatpush2.msra.mxu0 0.0
        %436 = vmatprep.subr.mxu0 0.0
        %437 = vmatpush2.msra.mxu0 0.0
        %438 = vmatprep.subr.mxu0 0.0
        %439 = vmatpush2.msra.mxu0 0.0
        %440 = vmatprep.subr.mxu0 0.0
        %441 = vmatpush2.msra.mxu0 0.0
        %442 = vmatprep.subr.mxu0 0.0
        %443 = vmatpush2.msra.mxu0 0.0
        %444 = vmatprep.mubr.f32.mxu0 0.0
        %445 = vmatmul.mubr.f32.gmra.mxu0 %v375
        %v446 = vpop.f32.mrf.mxu0
        %v447 = vadd.f32 %v366, %v446
        %v448 = vpop.f32.mrf.mxu0
        %v449 = vadd.f32 %v366, %v448
        %450 = vmatprep.mubr.f32.mxu0 0.0
        %451 = vmatmul.mubr.f32.gmra.mxu0 %v378
        %v452 = vpop.f32.mrf.mxu0
        %v453 = vadd.f32 %v371, %v452
        %v454 = vpop.f32.mrf.mxu0
        %v455 = vadd.f32 %v371, %v454
        %456 = vdwg.mxu0
        %v457 = vld [vmem:[%s4] sm:$0xff]
        %459 = vset.pattern.permute.xlu0 0
        %460 = vperm.xlu0 %459, %v457
        %v461 = vpop.permute.xlu0 %460
        %v463 = vmul.f32 %v461, %v355
        %v464 = vmul.f32 %v461, %v356
        %v465 = vrot.slane %v463, 4
        %v466 = vadd.f32 %v463, %v465
        %v467 = vrot.slane %v466, 2
        %v468 = vadd.f32 %v466, %v467
        %v469 = vrot.slane %v468, 1
        %v470 = vadd.f32 %v468, %v469
        %v471 = vrot.slane %v464, 4
        %v472 = vadd.f32 %v464, %v471
        %v473 = vrot.slane %v472, 2
        %v474 = vadd.f32 %v472, %v473
        %v475 = vrot.slane %v474, 1
        %v476 = vadd.f32 %v474, %v475
        %v477 = vadd.f32 %v470, %v453
        %v478 = vadd.f32 %v476, %v455
        %v479 = vxor.u32 %v477, 2147483648
        %v480 = vxor.u32 %v478, 2147483648
        %v481 = vmul.f32 %v479, 1.442695
        %v482 = vpow.pop %v481
        %v483 = vmul.f32 %v480, 1.442695
        %v484 = vpow.pop %v483
        %v485 = vadd.f32 %v482, 1.0
        %v486 = vadd.f32 %v484, 1.0
        %v487 = vrcp.pop %v485
        %v488 = vmul.f32 1.0, %v487
        %v489 = vrcp.pop %v486
        %v490 = vmul.f32 1.0, %v489
        %v491 = vsub.f32 %v355, %v447
        %v492 = vsub.f32 %v356, %v449
        %v493 = vlaneseq
        %v494 = vshrl.u32 %v493, 7
        %v495 = vsub.s32 0, %v494
        %v496 = vrot.slane %v488, %v495
        %v497 = vlaneseq
        %v498 = vshrl.u32 %v497, 7
        %v499 = vsub.s32 0, %v498
        %v500 = vrot.slane %v490, %v499
        %v501 = vmul.f32 %v496, %v491
        %v502 = vmul.f32 %v500, %v492
        %v503 = vadd.f32 %v447, %v501
        %v504 = vadd.f32 %v449, %v502
        %505 = vrot.lane.b32.xlu0 %v503, 17
        %v506 = vpop.permute.xlu0 %505
        %507 = vrot.lane.b32.xlu0 %v504, 17
        %v508 = vpop.permute.xlu0 %507
        %v509 = vlaneseq
        %v510 = vand.u32 %v509, 127
        %vm511 = vcmp.lt.s32.totalorder %v510, 17
        %v512 = vsel %vm511, %v506, %v508
        %v513 = vsel %vm511, %v508, %v506
        %v514 = vld [vmem:[%s7] ss:$8 sm:$0x3]
        %v516 = vlaneseq
        %v517 = vshrl.u32 %v516, 7
        %v518 = vsub.s32 0, %v517
        %v519 = vrot.slane %v514, %v518
        %v520 = vlaneseq
        %v521 = vshrl.u32 %v520, 7
        %v522 = vsub.s32 1, %v521
        %v523 = vrot.slane %v514, %v522
        %v526 = vmul.f32 %v513, %v519
        %v527 = vmul.f32 %v512, %v523
        %528 = vrot.lane.b32.xlu0 %v503, 16
        %v529 = vpop.permute.xlu0 %528
        %530 = vrot.lane.b32.xlu0 %v504, 16
        %v531 = vpop.permute.xlu0 %530
        %vm532 = vcmp.lt.s32.totalorder %v510, 16
        %v533 = vsel %vm532, %v529, %v531
        %v534 = vsel %vm532, %v531, %v529
        %s535 = scalar_lea.vmem %s7, 1
        %v536 = vld [vmem:[%s535] ss:$8 sm:$0x3]
        %v538 = vlaneseq
        %v539 = vshrl.u32 %v538, 7
        %v540 = vsub.s32 0, %v539
        %v541 = vrot.slane %v536, %v540
        %v542 = vlaneseq
        %v543 = vshrl.u32 %v542, 7
        %v544 = vsub.s32 1, %v543
        %v545 = vrot.slane %v536, %v544
        %v548 = vmul.f32 %v534, %v541
        %v549 = vmul.f32 %v533, %v545
        %550 = vrot.lane.b32.xlu0 %v503, 15
        %v551 = vpop.permute.xlu0 %550
        %552 = vrot.lane.b32.xlu0 %v504, 15
        %v553 = vpop.permute.xlu0 %552
        %vm554 = vcmp.lt.s32.totalorder %v510, 15
        %v555 = vsel %vm554, %v551, %v553
        %v556 = vsel %vm554, %v553, %v551
        %s557 = scalar_lea.vmem %s7, 2
        %v558 = vld [vmem:[%s557] ss:$8 sm:$0x3]
        %v560 = vlaneseq
        %v561 = vshrl.u32 %v560, 7
        %v562 = vsub.s32 0, %v561
        %v563 = vrot.slane %v558, %v562
        %v564 = vlaneseq
        %v565 = vshrl.u32 %v564, 7
        %v566 = vsub.s32 1, %v565
        %v567 = vrot.slane %v558, %v566
        %v570 = vmul.f32 %v556, %v563
        %v571 = vmul.f32 %v555, %v567
        %572 = vrot.lane.b32.xlu0 %v503, 1
        %v573 = vpop.permute.xlu0 %572
        %574 = vrot.lane.b32.xlu0 %v504, 1
        %v575 = vpop.permute.xlu0 %574
        %vm576 = vcmp.lt.s32.totalorder %v510, 1
        %v577 = vsel %vm576, %v573, %v575
        %v578 = vsel %vm576, %v575, %v573
        %s579 = scalar_lea.vmem %s7, 3
        %v580 = vld [vmem:[%s579] ss:$8 sm:$0x3]
        %v582 = vlaneseq
        %v583 = vshrl.u32 %v582, 7
        %v584 = vsub.s32 0, %v583
        %v585 = vrot.slane %v580, %v584
        %v586 = vlaneseq
        %v587 = vshrl.u32 %v586, 7
        %v588 = vsub.s32 1, %v587
        %v589 = vrot.slane %v580, %v588
        %v592 = vmul.f32 %v578, %v585
        %v593 = vmul.f32 %v577, %v589
        %594 = vrot.lane.b32.xlu0 %v503, 127
        %v595 = vpop.permute.xlu0 %594
        %596 = vrot.lane.b32.xlu0 %v504, 127
        %v597 = vpop.permute.xlu0 %596
        %vm598 = vcmp.lt.s32.totalorder %v510, 127
        %v599 = vsel %vm598, %v595, %v597
        %v600 = vsel %vm598, %v597, %v595
        %s601 = scalar_lea.vmem %s7, 5
        %v602 = vld [vmem:[%s601] ss:$8 sm:$0x3]
        %v604 = vlaneseq
        %v605 = vshrl.u32 %v604, 7
        %v606 = vsub.s32 0, %v605
        %v607 = vrot.slane %v602, %v606
        %v608 = vlaneseq
        %v609 = vshrl.u32 %v608, 7
        %v610 = vsub.s32 1, %v609
        %v611 = vrot.slane %v602, %v610
        %v614 = vmul.f32 %v599, %v607
        %v615 = vmul.f32 %v600, %v611
        %616 = vrot.lane.b32.xlu0 %v503, 113
        %v617 = vpop.permute.xlu0 %616
        %618 = vrot.lane.b32.xlu0 %v504, 113
        %v619 = vpop.permute.xlu0 %618
        %vm620 = vcmp.lt.s32.totalorder %v510, 113
        %v621 = vsel %vm620, %v617, %v619
        %v622 = vsel %vm620, %v619, %v617
        %s623 = scalar_lea.vmem %s7, 6
        %v624 = vld [vmem:[%s623] ss:$8 sm:$0x3]
        %v626 = vlaneseq
        %v627 = vshrl.u32 %v626, 7
        %v628 = vsub.s32 0, %v627
        %v629 = vrot.slane %v624, %v628
        %v630 = vlaneseq
        %v631 = vshrl.u32 %v630, 7
        %v632 = vsub.s32 1, %v631
        %v633 = vrot.slane %v624, %v632
        %v636 = vmul.f32 %v621, %v629
        %v637 = vmul.f32 %v622, %v633
        %638 = vrot.lane.b32.xlu0 %v503, 112
        %v639 = vpop.permute.xlu0 %638
        %640 = vrot.lane.b32.xlu0 %v504, 112
        %v641 = vpop.permute.xlu0 %640
        %vm642 = vcmp.lt.s32.totalorder %v510, 112
        %v643 = vsel %vm642, %v639, %v641
        %v644 = vsel %vm642, %v641, %v639
        %s645 = scalar_lea.vmem %s7, 7
        %v646 = vld [vmem:[%s645] ss:$8 sm:$0x3]
        %v648 = vlaneseq
        %v649 = vshrl.u32 %v648, 7
        %v650 = vsub.s32 0, %v649
        %v651 = vrot.slane %v646, %v650
        %v652 = vlaneseq
        %v653 = vshrl.u32 %v652, 7
        %v654 = vsub.s32 1, %v653
        %v655 = vrot.slane %v646, %v654
        %v658 = vmul.f32 %v643, %v651
        %v659 = vmul.f32 %v644, %v655
        %660 = vrot.lane.b32.xlu0 %v503, 111
        %v661 = vpop.permute.xlu0 %660
        %662 = vrot.lane.b32.xlu0 %v504, 111
        %v663 = vpop.permute.xlu0 %662
        %vm664 = vcmp.lt.s32.totalorder %v510, 111
        %v665 = vsel %vm664, %v661, %v663
        %v666 = vsel %vm664, %v663, %v661
        %s667 = scalar_lea.vmem %s7, 16
        %v668 = vld [vmem:[%s667] ss:$8 sm:$0x3]
        %v670 = vlaneseq
        %v671 = vshrl.u32 %v670, 7
        %v672 = vsub.s32 0, %v671
        %v673 = vrot.slane %v668, %v672
        %v674 = vlaneseq
        %v675 = vshrl.u32 %v674, 7
        %v676 = vsub.s32 1, %v675
        %v677 = vrot.slane %v668, %v676
        %v680 = vmul.f32 %v665, %v673
        %v681 = vmul.f32 %v666, %v677
        %v682 = vld [vmem:[#allocation5] sm:$0xff]
        %v683 = vld [vmem:[%s6] sm:$0xff]
        %685 = vset.pattern.permute.xlu0 0
        %686 = vperm.xlu0 %685, %v683
        %v687 = vpop.permute.xlu0 %686
        %vm689 = vcmask 588800
        %v691 = vsel %vm689, %v682, 0
        %693 = vmatprep.subr.mxu0 0.0
        %694 = vmatpush1.msra.mxu0 0.0
        %695 = vmatprep.subr.mxu0 0.0
        %696 = vmatpush1.msra.mxu0 0.0
        %697 = vmatprep.subr.mxu0 0.0
        %698 = vmatpush1.msra.mxu0 0.0
        %699 = vmatprep.subr.mxu0 0.0
        %700 = vmatpush1.msra.mxu0 0.0
        %701 = vmatprep.subr.mxu0 0.0
        %702 = vmatpush1.msra.mxu0 0.0
        %703 = vmatprep.subr.mxu0 0.0
        %704 = vmatpush1.msra.mxu0 0.0
        %705 = vmatprep.subr.mxu0 0.0
        %706 = vmatpush1.msra.mxu0 0.0
        %707 = vmatprep.subr.mxu0 %v681
        %708 = vmatpush1.msra.mxu0 %v680
        %709 = vmatprep.subr.mxu0 %v659
        %710 = vmatpush1.msra.mxu0 %v658
        %711 = vmatprep.subr.mxu0 %v637
        %712 = vmatpush1.msra.mxu0 %v636
        %713 = vmatprep.subr.mxu0 %v615
        %714 = vmatpush1.msra.mxu0 %v614
        %715 = vmatprep.subr.mxu0 %v504
        %716 = vmatpush1.msra.mxu0 %v503
        %717 = vmatprep.subr.mxu0 %v593
        %718 = vmatpush1.msra.mxu0 %v592
        %719 = vmatprep.subr.mxu0 %v571
        %720 = vmatpush1.msra.mxu0 %v570
        %721 = vmatprep.subr.mxu0 %v549
        %722 = vmatpush1.msra.mxu0 %v548
        %723 = vmatprep.subr.mxu0 %v527
        %724 = vmatpush1.msra.mxu0 %v526
        %725 = vmatprep.subr.mxu0 0.0
        %726 = vmatpush2.msra.mxu0 0.0
        %727 = vmatprep.subr.mxu0 0.0
        %728 = vmatpush2.msra.mxu0 0.0
        %729 = vmatprep.subr.mxu0 0.0
        %730 = vmatpush2.msra.mxu0 0.0
        %731 = vmatprep.subr.mxu0 0.0
        %732 = vmatpush2.msra.mxu0 0.0
        %733 = vmatprep.subr.mxu0 0.0
        %734 = vmatpush2.msra.mxu0 0.0
        %735 = vmatprep.subr.mxu0 0.0
        %736 = vmatpush2.msra.mxu0 0.0
        %737 = vmatprep.subr.mxu0 0.0
        %738 = vmatpush2.msra.mxu0 0.0
        %739 = vmatprep.subr.mxu0 0.0
        %740 = vmatpush2.msra.mxu0 0.0
        %741 = vmatprep.subr.mxu0 0.0
        %742 = vmatpush2.msra.mxu0 0.0
        %743 = vmatprep.subr.mxu0 0.0
        %744 = vmatpush2.msra.mxu0 0.0
        %745 = vmatprep.subr.mxu0 0.0
        %746 = vmatpush2.msra.mxu0 0.0
        %747 = vmatprep.subr.mxu0 0.0
        %748 = vmatpush2.msra.mxu0 0.0
        %749 = vmatprep.subr.mxu0 0.0
        %750 = vmatpush2.msra.mxu0 0.0
        %751 = vmatprep.subr.mxu0 0.0
        %752 = vmatpush2.msra.mxu0 0.0
        %753 = vmatprep.subr.mxu0 0.0
        %754 = vmatpush2.msra.mxu0 0.0
        %755 = vmatprep.subr.mxu0 0.0
        %756 = vmatpush2.msra.mxu0 0.0
        %757 = vmatprep.mubr.f32.mxu0 0.0
        %758 = vmatmul.mubr.f32.gmra.mxu0 %v691
        %v759 = vpop.f32.mrf.mxu0
        %v760 = vadd.f32 %v687, %v759
        %v761 = vpop.f32.mrf.mxu0
        %v762 = vadd.f32 %v687, %v761
        %763 = vdwg.mxu0
        %764 = vst [vmem:[%s349] sm:$0xff] %v760
        %765 = vst [vmem:[%s349 + $0x8] sm:$0xff] %v762
        %s766 = sand.u32 %s212, 1
        %s767 = scalar_lea.sflag [#allocation4], %s766
        %s768 = sand.u32 %s212, 1
        %s769 = smul.addr %s768, 16
        %s770 = scalar_lea.vmem [#allocation7], %s769
        // Predicated region
        $region61: #{tpu_custom_call.1} parent=51 // pred_check
          %p771 = pneg %p222
        $region62: #{tpu_custom_call.1} parent=51 // pred_check_branch
          %773 = sbr.rel (%p771) target = $region64
        $region63: #{tpu_custom_call.1} parent=51 // pred_region
          %s775 = ssub.s32 256, 256
          %776 = vsyncadd %s767, %s775
          %s777 = smul.addr %s26, 2
          %s778 = smul.addr %s777, 128
          %s779 = scalar_lea.hbm %s8, %s778
          %s781 = sshll.u32 %s770, 4
          %s782 = int_to_ptr.vmem [resolvable:$true] %s781
          %784 = dma.vmem_to_hbm [thread:$0]  %s782, 256, %s779, %s767
        $region64: #{tpu_custom_call.1} parent=51 // pred_fallthru
          _
      $region52: #{tpu_custom_call.1} parent=5 // pred_fallthru
        _
      %p785 = scmp.le.s32.totalorder 2, %s21
      // Predicated region
      $region65: #{tpu_custom_call.1} parent=5 // pred_check
        %p786 = pneg %p785
      $region66: #{tpu_custom_call.1} parent=5 // pred_check_branch
        %788 = sbr.rel (%p786) target = $region68
      $region67: #{tpu_custom_call.1} parent=5 // pred_region
        %s789 = ssub.s32 %s21, 2
        // Predicated region
        $region69: #{tpu_custom_call.1} parent=67 // pred_check
          %p790 = pneg %p228
        $region70: #{tpu_custom_call.1} parent=67 // pred_check_branch
          %792 = sbr.rel (%p790) target = $region72
        $region71: #{tpu_custom_call.1} parent=67 // pred_region
          %s793 = sand.u32 %s213, 1
          %s794 = scalar_lea.sflag [#allocation4], %s793
          %s795 = sand.u32 %s213, 1
          %s796 = smul.addr %s795, 16
          %s797 = scalar_lea.vmem [#allocation7], %s796
          %798 = dma.done %s794, 256
        $region72: #{tpu_custom_call.1} parent=67 // pred_fallthru
          _
      $region68: #{tpu_custom_call.1} parent=5 // pred_fallthru
        _
    $region6: #{tpu_custom_call.1} parent=1 // loop_footer
      %s25 = sadd.s32 1, %s21
    $region7: #{tpu_custom_call.1} parent=1 // loop_footer_branch
      %20 = sbr.rel target = $region3
    $region8: #{tpu_custom_call.1} parent=1 // loop_exit
      _
    %799 = vsyncpa [#allocation3], 1
    %s800 = scalar_lea.sflag [#allocation3], 1
    %801 = vsyncpa %s800, 1
    %802 = vsyncpa [#allocation6], 1
    %803 = vsyncpa [#allocation4], 1
    %s804 = scalar_lea.sflag [#allocation4], 1
    %805 = vsyncpa %s804, 1

</llo_original>
